<compile_context>
chip_gen: v7x
topology: tpu7x:2x2x1
jax: 0.10.0
libtpu: 0.0.40
codegen_flags: <defaults>
</compile_context>

<pallas_src>
import jax
import jax.numpy as jnp
from jax.experimental import pallas as pl
from jax.experimental.pallas import tpu as pltpu

# ----------------------------- dims ---------------------------------------
B, S, D, V = 2, 8, 32, 64            # batch, seq, embedding_dim, vocab
NUM_HEADS = 2                        # config.bottleneck.num_heads
SPLICE_HEAD_OFFSET = 1               # config.bottleneck.splice_head_offset
SEP_SPLICE_IX = D // NUM_HEADS * SPLICE_HEAD_OFFSET   # = 16
POOL_HEADS = 2                       # MultiHeadedPooling head count
DH = D // POOL_HEADS                 # dim per pooling head

EMB_ROWS = 2 * B * S + S             # packed embedding slab rows (src | dec | pos)
W_LANES = 2 * D + V                  # packed weight slab lanes (= 128 here: lane-dense)

# f32-safe large negative for masking; switch to finfo(dtype).min/2 if
# activations are ever cast to bf16.
NEG_INF = -1e30

# MXU operand dtype. float32 keeps the tight numerical match with the reference;
# set to jnp.bfloat16 on v6e/v7x for full-rate MXU (elementwise math stays f32).
MXU_DTYPE = jnp.float32


# --------------------------- fused Pallas kernel ---------------------------

def _fused_forward_kernel(len_ref, emb_ref, w_ref, logits_ref, pooled_ref):
    """Fused SequenceEncoder -> PoolingBottleneck -> SequenceDecoder.

    len_ref   : SMEM (B,) int32           scalar-prefetched source lengths
    emb_ref   : (2*B*S + S, D)            [src_emb | dec_emb | pos_emb] slab
    w_ref     : (D, 2*D + V)              [folded pooling (vals|scores) | vocab proj]
    logits_ref: (B, S, V)                 decoder logits
    pooled_ref: (B, D)                    pooled code (reshaped to (B,1,D) outside)
    """
    # ---- unpack the two DMA'd slabs with static, tile-aligned slices --------
    semb = emb_ref[:B * S, :]                         # (B*S, D) source embeddings
    demb = emb_ref[B * S:2 * B * S, :]                # (B*S, D) decoder-input embeddings
    pos = emb_ref[2 * B * S:, :]                      # (S, D)   position embeddings

    w_pool = w_ref[:, :2 * D].astype(MXU_DTYPE)       # (D, 2D) folded [value | score]
    w_dec = w_ref[:, 2 * D:].astype(MXU_DTYPE)        # (D, V)  vocab projection

    # ---- decoder base term: no dependence on the pooling chain, so the MXU
    # work overlaps the mask/softmax running on the VPU/EUP --------------------
    base = jnp.dot(demb.astype(MXU_DTYPE), w_dec,
                   preferred_element_type=jnp.float32)            # (B*S, V)

    # ---- encoder (+pos) feeding the folded pooling matmul --------------------
    x = (semb.reshape(B, S, D) + pos[None, :, :]).reshape(B * S, D)
    vs = jnp.dot(x.astype(MXU_DTYPE), w_pool,
                 preferred_element_type=jnp.float32)              # (B*S, 2D)
    vals = vs[:, :D].reshape(B, S, D)
    # lane d of the score half already holds the score of head d // DH, so the
    # masked softmax / weighted sum below is pure lanewise VPU/EUP work.
    scores = vs[:, D:].reshape(B, S, D)

    # ---- length mask built at (B, S, 1); broadcast over D at the where ------
    batch_idx = jax.lax.broadcasted_iota(jnp.int32, (B, S, 1), 0)
    pos_idx = jax.lax.broadcasted_iota(jnp.int32, (B, S, 1), 1)
    seq_len = jnp.full((B, S, 1), len_ref[0], jnp.int32)
    for b in range(1, B):                              # B is tiny and static
        seq_len = jnp.where(batch_idx == b, len_ref[b], seq_len)
    scores = jnp.where(pos_idx < seq_len, scores, NEG_INF)        # (B, S, D)

    # ---- masked softmax-pool; divide replaced by one EUP reciprocal ---------
    m = jnp.max(scores, axis=1, keepdims=True)                    # (B, 1, D)
    e = jnp.exp(scores - m)                                       # (B, S, D)
    num = jnp.sum(e * vals, axis=1)                               # (B, D)
    inv = pl.reciprocal(jnp.sum(e, axis=1), approx=True)          # (B, D)
    pooled = num * inv                                            # (B, D)
    pooled_ref[...] = pooled

    # ---- decoder conditioning: tiny (B, V) matmul + broadcast add -----------
    cond = jnp.dot(pooled.astype(MXU_DTYPE), w_dec,
                   preferred_element_type=jnp.float32)            # (B, V)
    logits_ref[...] = base.reshape(B, S, V) + cond[:, None, :]


def _decoder_only_kernel(demb_ref, enc_ref, wdec_ref, logits_ref):
    """Decoder-only path used when memory['encoding'] is already cached."""
    w_dec = wdec_ref[...].astype(MXU_DTYPE)
    base = jnp.dot(demb_ref[...].astype(MXU_DTYPE), w_dec,
                   preferred_element_type=jnp.float32)            # (B*S, V)
    cond = jnp.dot(enc_ref[...].astype(MXU_DTYPE), w_dec,
                   preferred_element_type=jnp.float32)            # (B, V)
    logits_ref[...] = base.reshape(B, S, V) + cond[:, None, :]


# ------------------------------ wrappers -----------------------------------

@jax.jit
def _fused_forward(params, src_tokens, src_len, out_tokens):
    # embedding gathers + slab packing stay as (tiny) XLA glue feeding the kernel
    src_emb = jnp.take(params['enc_embedding'], src_tokens.reshape(-1), axis=0)
    dec_emb = jnp.take(params['dec_embedding'], out_tokens.reshape(-1), axis=0)
    emb_slab = jnp.concatenate([src_emb, dec_emb, params['enc_pos']], axis=0)

    logits, pooled = pl.pallas_call(
        _fused_forward_kernel,
        out_shape=(jax.ShapeDtypeStruct((B, S, V), jnp.float32),
                   jax.ShapeDtypeStruct((B, D), jnp.float32)),
        grid_spec=pltpu.PrefetchScalarGridSpec(
            num_scalar_prefetch=1,
            grid=(1,),
            in_specs=[pl.BlockSpec((EMB_ROWS, D), lambda i, lens: (0, 0)),
                      pl.BlockSpec((D, W_LANES), lambda i, lens: (0, 0))],
            out_specs=[pl.BlockSpec((B, S, V), lambda i, lens: (0, 0, 0)),
                       pl.BlockSpec((B, D), lambda i, lens: (0, 0))]),
        compiler_params=pltpu.CompilerParams(
            dimension_semantics=("arbitrary",)),   # single grid step
    )(src_len, emb_slab, params['w_packed'])

    return logits, pooled.reshape(B, 1, D)


@jax.jit
def _decoder_only(params, out_tokens, encoding):
    dec_emb = jnp.take(params['dec_embedding'], out_tokens.reshape(-1), axis=0)
    logits = pl.pallas_call(
        _decoder_only_kernel,
        out_shape=jax.ShapeDtypeStruct((B, S, V), jnp.float32),
        grid=(1,),
        in_specs=[pl.BlockSpec((B * S, D), lambda i: (0, 0)),
                  pl.BlockSpec((B, D), lambda i: (0, 0)),
                  pl.BlockSpec((D, V), lambda i: (0, 0))],
        out_specs=pl.BlockSpec((B, S, V), lambda i: (0, 0, 0)),
        compiler_params=pltpu.CompilerParams(
            dimension_semantics=("arbitrary",)),
    )(dec_emb, encoding.reshape(B, D), params['dec_proj'])
    return logits


# -------------------- BottleneckAutoencoderModel.forward -------------------

def forward(params, batch, output, memory=None):
    if memory is None:
        memory = {}
    if 'encoding' not in memory:
        # seq_encoder + bottleneck + seq_decoder, fully fused in one kernel.
        logits, encoding_pooled = _fused_forward(
            params, batch['source'], batch['source_len'], output)

        memory['encoding_pooled'] = encoding_pooled        # pre-bottleneck pooled
        prebn_encoding_pooled = memory['encoding_pooled']  # identity post-pool xform
        memory['encoding'] = encoding_pooled
        memory['encoding_mask'] = None

        sg = jax.lax.stop_gradient
        # reduce_fn == 'max' over dim=1 of a (B, 1, D') tensor is an identity,
        # so the sep_encoding_* entries are plain detached slices (no kernels).
        if SEP_SPLICE_IX > 0:
            memory['sep_encoding_1'] = sg(
                prebn_encoding_pooled[:, :, :SEP_SPLICE_IX])
            memory['sep_encoding_1_after_bottleneck'] = sg(
                encoding_pooled[:, :, :SEP_SPLICE_IX])
        memory['sep_encoding_2'] = sg(
            prebn_encoding_pooled[:, :, SEP_SPLICE_IX:])
        memory['sep_encoding_2_after_bottleneck'] = sg(
            encoding_pooled[:, :, SEP_SPLICE_IX:])
        return logits, memory

    # cached-encoding path: run only the decoder
    logits = _decoder_only(params, output, memory['encoding'])
    return logits, memory


# ------------------------------ params --------------------------------------

def init_params(key):
    ks = jax.random.split(key, 7)
    scale = 0.125
    hp = jax.lax.Precision.HIGHEST

    enc_embedding = scale * jax.random.normal(ks[0], (V, D), jnp.float32)
    enc_pos = scale * jax.random.normal(ks[1], (S, D), jnp.float32)
    enc_proj = scale * jax.random.normal(ks[2], (D, D), jnp.float32)
    wk = scale * jax.random.normal(ks[3], (D, POOL_HEADS), jnp.float32)
    wv = scale * jax.random.normal(ks[4], (D, D), jnp.float32)
    dec_embedding = scale * jax.random.normal(ks[5], (V, D), jnp.float32)
    dec_proj = scale * jax.random.normal(ks[6], (D, V), jnp.float32)

    # combined pooling weight: one MXU push gives [values | head-expanded scores]
    wk_expanded = jnp.repeat(wk, DH, axis=1)              # column d holds wk[:, d // DH]
    pool_w_combined = jnp.concatenate([wv, wk_expanded], axis=1)      # (D, 2D)
    # fold the encoder projection offline: x @ Wenc @ Wpool == x @ (Wenc @ Wpool)
    pool_w_folded = jnp.dot(enc_proj, pool_w_combined, precision=hp)  # (D, 2D)
    # single 128-lane-dense weight slab, DMA'd once per forward
    w_packed = jnp.concatenate([pool_w_folded, dec_proj], axis=1)     # (D, 2D + V)

    return {
        'enc_embedding': enc_embedding,
        'enc_pos': enc_pos,
        'enc_proj': enc_proj,          # kept for the reference check
        'pool_wk': wk,                 # kept for the reference check
        'pool_wv': wv,                 # kept for the reference check
        'dec_embedding': dec_embedding,
        'dec_proj': dec_proj,          # used by the decoder-only path + reference
        'w_packed': w_packed,          # used by the fused kernel
    }


# --------------------------- pure-JAX reference -----------------------------

def _reference_forward(params, src_tokens, src_len, out_tokens):
    hp = jax.lax.Precision.HIGHEST
    emb = params['enc_embedding'][src_tokens] + params['enc_pos'][None]
    enc = jnp.einsum('bsd,de->bse', emb, params['enc_proj'], precision=hp)
    scores = jnp.einsum('bsd,dh->bsh', enc, params['pool_wk'], precision=hp)
    mask = jnp.arange(S)[None, :, None] < src_len[:, None, None]
    scores = jnp.where(mask, scores, NEG_INF)
    probs = jax.nn.softmax(scores, axis=1)                          # (B, S, H)
    vals = jnp.einsum('bsd,de->bse', enc, params['pool_wv'], precision=hp)
    vals = vals.reshape(B, S, POOL_HEADS, DH)
    pooled = jnp.einsum('bsh,bshd->bhd', probs, vals,
                        precision=hp).reshape(B, 1, D)
    demb = params['dec_embedding'][out_tokens]
    logits = jnp.einsum('bsd,dv->bsv', demb + pooled, params['dec_proj'],
                        precision=hp)
    return logits, pooled


# ------------------------------- main ---------------------------------------

if __name__ == "__main__":
    key = jax.random.PRNGKey(0)
    k_src, k_out, k_par = jax.random.split(key, 3)

    src_tokens = jax.random.randint(k_src, (B, S), 0, V, dtype=jnp.int32)
    src_len = jnp.array([S, S - 3], dtype=jnp.int32)   # lengths must be in [1, S]
    out_tokens = jax.random.randint(k_out, (B, S), 0, V, dtype=jnp.int32)

    params = init_params(k_par)
    batch = {'source': src_tokens, 'source_len': src_len, '_global_step': 0}

    logits, memory = forward(params, batch, out_tokens)
    jax.block_until_ready(logits)
    jax.block_until_ready(memory['encoding'])

    # shape contract of the original module
    assert logits.shape == (B, S, V)
    assert memory['encoding'].shape == (B, 1, D)
    assert memory['sep_encoding_1'].shape == (B, 1, SEP_SPLICE_IX)
    assert memory['sep_encoding_2'].shape == (B, 1, D - SEP_SPLICE_IX)

    # numerical check against a pure-JAX reference of the same forward
    ref_logits, ref_pooled = _reference_forward(params, src_tokens, src_len,
                                                out_tokens)
    assert jnp.allclose(logits, ref_logits, atol=1e-3, rtol=1e-2), \
        float(jnp.max(jnp.abs(logits - ref_logits)))
    assert jnp.allclose(memory['encoding'], ref_pooled, atol=1e-3, rtol=1e-2), \
        float(jnp.max(jnp.abs(memory['encoding'] - ref_pooled)))

    # cached-encoding path (decoder-only kernel) must agree with the fused path
    logits_cached, _ = forward(params, batch, out_tokens, memory=memory)
    jax.block_until_ready(logits_cached)
    assert jnp.allclose(logits, logits_cached, atol=1e-3, rtol=1e-2)

    print("KERNEL_OK")
</pallas_src>

<mosaic_0001>
module attributes {stable_mosaic.version = 11 : i64} {
  func.func @_fused_forward_kernel(%arg0: i32, %arg1: memref<2xi32, #tpu.memory_space<smem>>, %arg2: memref<40x32xf32, #tpu.memory_space<vmem>>, %arg3: memref<32x128xf32, #tpu.memory_space<vmem>>, %arg4: memref<2x8x64xf32, #tpu.memory_space<vmem>>, %arg5: memref<2x32xf32, #tpu.memory_space<vmem>>) attributes {dimension_semantics = [#tpu.dimension_semantics<arbitrary>], iteration_bounds = array<i64: 1>, scalar_prefetch = 1 : i64, scratch_operands = 0 : i64, tpu.core_type = #tpu.core_type<tc>, window_params = [{pipeline_mode = #tpu.pipeline_mode<synchronous>, transform_indices = @transform_0, window_bounds = array<i64: 40, 32>}, {pipeline_mode = #tpu.pipeline_mode<synchronous>, transform_indices = @transform_1, window_bounds = array<i64: 32, 128>}, {pipeline_mode = #tpu.pipeline_mode<synchronous>, transform_indices = @transform_2, window_bounds = array<i64: 2, 8, 64>}, {pipeline_mode = #tpu.pipeline_mode<synchronous>, transform_indices = @transform_3, window_bounds = array<i64: 2, 32>}]} {
    %c0 = arith.constant 0 : index
    %c0_0 = arith.constant 0 : index
    %0 = vector.load %arg2[%c0, %c0_0] : memref<40x32xf32, #tpu.memory_space<vmem>>, vector<16x32xf32>
    %c16 = arith.constant 16 : index
    %c0_1 = arith.constant 0 : index
    %1 = vector.load %arg2[%c16, %c0_1] : memref<40x32xf32, #tpu.memory_space<vmem>>, vector<16x32xf32>
    %c32 = arith.constant 32 : index
    %c0_2 = arith.constant 0 : index
    %2 = vector.load %arg2[%c32, %c0_2] : memref<40x32xf32, #tpu.memory_space<vmem>>, vector<8x32xf32>
    %c0_3 = arith.constant 0 : index
    %c0_4 = arith.constant 0 : index
    %3 = vector.load %arg3[%c0_3, %c0_4] : memref<32x128xf32, #tpu.memory_space<vmem>>, vector<32x64xf32>
    %c0_5 = arith.constant 0 : index
    %c64 = arith.constant 64 : index
    %4 = vector.load %arg3[%c0_5, %c64] : memref<32x128xf32, #tpu.memory_space<vmem>>, vector<32x64xf32>
    %cst = arith.constant dense<0.000000e+00> : vector<16x64xf32>
    %5 = tpu.matmul %1, %4, %cst {dimension_numbers = #tpu.dot_dimension_numbers<[1], [0], [0], [1], [0, 0, 1, 1], [], []>} : vector<16x32xf32>, vector<32x64xf32>, vector<16x64xf32> -> vector<16x64xf32>
    %6 = vector.shape_cast %0 : vector<16x32xf32> to vector<2x8x32xf32>
    %7 = vector.shape_cast %2 : vector<8x32xf32> to vector<1x8x32xf32>
    %8 = vector.broadcast %7 : vector<1x8x32xf32> to vector<2x8x32xf32>
    %9 = arith.addf %6, %8 : vector<2x8x32xf32>
    %10 = vector.shape_cast %9 : vector<2x8x32xf32> to vector<16x32xf32>
    %cst_6 = arith.constant dense<0.000000e+00> : vector<16x64xf32>
    %11 = tpu.matmul %10, %3, %cst_6 {dimension_numbers = #tpu.dot_dimension_numbers<[1], [0], [0], [1], [0, 0, 1, 1], [], []>} : vector<16x32xf32>, vector<32x64xf32>, vector<16x64xf32> -> vector<16x64xf32>
    %12 = vector.extract_strided_slice %11 {offsets = [0, 0], sizes = [16, 32], strides = [1, 1]} : vector<16x64xf32> to vector<16x32xf32>
    %13 = vector.shape_cast %12 : vector<16x32xf32> to vector<2x8x32xf32>
    %14 = vector.extract_strided_slice %11 {offsets = [0, 32], sizes = [16, 32], strides = [1, 1]} : vector<16x64xf32> to vector<16x32xf32>
    %15 = vector.shape_cast %14 : vector<16x32xf32> to vector<2x8x32xf32>
    %16 = tpu.iota {dimensions = array<i32: 0>} : vector<2x8x1xi32>
    %17 = tpu.iota {dimensions = array<i32: 1>} : vector<2x8x1xi32>
    %c0_7 = arith.constant 0 : index
    %18 = memref.load %arg1[%c0_7] : memref<2xi32, #tpu.memory_space<smem>>
    %19 = vector.broadcast %18 : i32 to vector<2x8x1xi32>
    %c1_i32 = arith.constant 1 : i32
    %20 = vector.broadcast %c1_i32 : i32 to vector<2x8x1xi32>
    %21 = arith.cmpi eq, %16, %20 : vector<2x8x1xi32>
    %c1 = arith.constant 1 : index
    %22 = memref.load %arg1[%c1] : memref<2xi32, #tpu.memory_space<smem>>
    %23 = vector.broadcast %22 : i32 to vector<2x8x1xi32>
    %24 = arith.select %21, %23, %19 : vector<2x8x1xi1>, vector<2x8x1xi32>
    %25 = arith.cmpi slt, %17, %24 : vector<2x8x1xi32>
    %cst_8 = arith.constant -1.000000e+30 : f32
    %26 = vector.shape_cast %25 : vector<2x8x1xi1> to vector<2x8x1xi1>
    %27 = vector.broadcast %26 : vector<2x8x1xi1> to vector<2x8x32xi1>
    %28 = vector.broadcast %cst_8 : f32 to vector<2x8x32xf32>
    %29 = arith.select %27, %15, %28 : vector<2x8x32xi1>, vector<2x8x32xf32>
    %cst_9 = arith.constant dense<0xFF800000> : vector<2x32xf32>
    %30 = vector.multi_reduction <maximumf>, %29, %cst_9 [1] : vector<2x8x32xf32> to vector<2x32xf32>
    %31 = vector.shape_cast %30 : vector<2x32xf32> to vector<2x1x32xf32>
    %32 = vector.broadcast %31 : vector<2x1x32xf32> to vector<2x8x32xf32>
    %33 = arith.subf %29, %32 : vector<2x8x32xf32>
    %34 = math.exp %33 : vector<2x8x32xf32>
    %35 = arith.mulf %34, %13 : vector<2x8x32xf32>
    %cst_10 = arith.constant dense<0.000000e+00> : vector<2x32xf32>
    %36 = vector.multi_reduction <add>, %35, %cst_10 [1] : vector<2x8x32xf32> to vector<2x32xf32>
    %cst_11 = arith.constant dense<0.000000e+00> : vector<2x32xf32>
    %37 = vector.multi_reduction <add>, %34, %cst_11 [1] : vector<2x8x32xf32> to vector<2x32xf32>
    %38 = tpu.reciprocal %37 {approx = true} : vector<2x32xf32> -> vector<2x32xf32>
    %39 = arith.mulf %36, %38 : vector<2x32xf32>
    %c0_12 = arith.constant 0 : index
    %c0_13 = arith.constant 0 : index
    %40 = vector.load %arg5[%c0_12, %c0_13] : memref<2x32xf32, #tpu.memory_space<vmem>>, vector<2x32xf32>
    tpu.vector_store %arg5[%c0_12, %c0_13], %39 {strides = array<i32>} : memref<2x32xf32, #tpu.memory_space<vmem>>, vector<2x32xf32>,
    %cst_14 = arith.constant dense<0.000000e+00> : vector<2x64xf32>
    %41 = tpu.matmul %39, %4, %cst_14 {dimension_numbers = #tpu.dot_dimension_numbers<[1], [0], [0], [1], [0, 0, 1, 1], [], []>} : vector<2x32xf32>, vector<32x64xf32>, vector<2x64xf32> -> vector<2x64xf32>
    %42 = vector.shape_cast %5 : vector<16x64xf32> to vector<2x8x64xf32>
    %43 = vector.shape_cast %41 : vector<2x64xf32> to vector<2x1x64xf32>
    %44 = vector.broadcast %43 : vector<2x1x64xf32> to vector<2x8x64xf32>
    %45 = arith.addf %42, %44 : vector<2x8x64xf32>
    %c0_15 = arith.constant 0 : index
    %c0_16 = arith.constant 0 : index
    %c0_17 = arith.constant 0 : index
    %46 = vector.load %arg4[%c0_15, %c0_16, %c0_17] : memref<2x8x64xf32, #tpu.memory_space<vmem>>, vector<2x8x64xf32>
    tpu.vector_store %arg4[%c0_15, %c0_16, %c0_17], %45 {strides = array<i32>} : memref<2x8x64xf32, #tpu.memory_space<vmem>>, vector<2x8x64xf32>,
    return
  }
  func.func @transform_0(%arg0: i32, %arg1: memref<2xi32, #tpu.memory_space<smem>>) -> (i32, i32) {
    %c0_i32 = arith.constant 0 : i32
    %c0_i32_0 = arith.constant 0 : i32
    %c0_i32_1 = arith.constant 0 : i32
    return %c0_i32, %c0_i32_0 : i32, i32
  }
  func.func @transform_1(%arg0: i32, %arg1: memref<2xi32, #tpu.memory_space<smem>>) -> (i32, i32) {
    %c0_i32 = arith.constant 0 : i32
    %c0_i32_0 = arith.constant 0 : i32
    %c0_i32_1 = arith.constant 0 : i32
    return %c0_i32, %c0_i32_0 : i32, i32
  }
  func.func @transform_2(%arg0: i32, %arg1: memref<2xi32, #tpu.memory_space<smem>>) -> (i32, i32, i32) {
    %c0_i32 = arith.constant 0 : i32
    %c0_i32_0 = arith.constant 0 : i32
    %c0_i32_1 = arith.constant 0 : i32
    %c0_i32_2 = arith.constant 0 : i32
    return %c0_i32, %c0_i32_0, %c0_i32_1 : i32, i32, i32
  }
  func.func @transform_3(%arg0: i32, %arg1: memref<2xi32, #tpu.memory_space<smem>>) -> (i32, i32) {
    %c0_i32 = arith.constant 0 : i32
    %c0_i32_0 = arith.constant 0 : i32
    %c0_i32_1 = arith.constant 0 : i32
    return %c0_i32, %c0_i32_0 : i32, i32
  }
}

</mosaic_0001>

<llo_original>
// kernel: _fused_forward.1
$region0: #{_fused_forward.1}
  #allocation0 [shape = 'u32[]', space=smem, size = 0x4, offset = 0x4, fixed_abs, tag = 'smem constant byte address 0x4 - core index']
  #allocation1 [shape = 'u32[144,128]{1,0:T(1,128)}', space=vmem, size = 0x12000, scoped, tag = 'internal scratch']
  #allocation2 [shape = 's32[1]{0}', space=sflag, size = 0x4, scoped, tag = 'scoped memory for _fused_forward.1']
  #allocation3 [shape = 'u8[512]{0}', space=smem, size = 0x200, scoped, tag = 'prefetched SMEM operand 0']
  %s0 = inlined_call_operand.vmem [shape: s32[2], index: 0, kind: input, shape index: {}]
  %s1 = inlined_call_operand.vmem [shape: f32[40,32], index: 1, kind: input, shape index: {}]
  %s2 = inlined_call_operand.vmem [shape: f32[32,128], index: 2, kind: input, shape index: {}]
  %s3 = inlined_call_operand.hbm [shape: f32[2,8,64], index: 3, kind: output, shape index: {0}]
  %s4 = inlined_call_operand.hbm [shape: f32[2,32], index: 4, kind: output, shape index: {1}]
  %5 = xla_tuple %s3, %s4
  %s6 = sld [smem:[#allocation0]]
  $region26: #{_fused_forward.1} parent=0
    _
  %s8 = ssub.s32 1, %s6
  %s9 = scalar_select 0, %s8, %s6
  %s10 = sshll.u32 %s0, 4
  %s11 = int_to_ptr.vmem [resolvable:$true] %s10
  %13 = dma.vmem_to_smem %s11, 16, [#allocation3], [#allocation2]
  %14 = dma.done [#allocation2], 16
  %15 = sfence
  $region1: #{_fused_forward.1} parent=0
    #allocation4 [shape = 'u8[8192]{0}', space=vmem, size = 0x2000, scoped, tag = 'output window, operand 0, single buffered']
    #allocation5 [shape = 's32[1]{0}', space=sflag, size = 0x4, scoped, tag = 'scoped memory for _fused_forward.1']
    #allocation6 [shape = 'u8[1024]{0}', space=vmem, size = 0x400, scoped, tag = 'output window, operand 1, single buffered']
    #allocation7 [shape = 's32[1]{0}', space=sflag, size = 0x4, scoped, tag = 'scoped memory for _fused_forward.1']
    %16 = vsyncpa [#allocation5], 0
    %17 = vsyncpa [#allocation7], 0
    // Predicated region
    $region2: #{_fused_forward.1} parent=1 // pred_check
      _
    $region3: #{_fused_forward.1} parent=1 // pred_check_branch
      %19 = sbr.rel (0) target = $region5
    $region4: #{_fused_forward.1} parent=1 // pred_region
      _
    $region5: #{_fused_forward.1} parent=1 // pred_fallthru
      _
    // Predicated region
    $region6: #{_fused_forward.1} parent=1 // pred_check
      _
    $region7: #{_fused_forward.1} parent=1 // pred_check_branch
      %21 = sbr.rel (0) target = $region9
    $region8: #{_fused_forward.1} parent=1 // pred_region
      _
    $region9: #{_fused_forward.1} parent=1 // pred_fallthru
      _
    %v22 = vld [vmem:[%s1] sm:$0xff]
    %v23 = vld [vmem:[%s1 + $0x8] sm:$0xff]
    %v24 = vld [vmem:[%s1 + $0x10] sm:$0xff]
    %v25 = vld [vmem:[%s1 + $0x18] sm:$0xff]
    %v26 = vld [vmem:[%s1 + $0x20] sm:$0xff]
    %v27 = vld [vmem:[%s2] sm:$0xff]
    %v28 = vld [vmem:[%s2 + $0x8] sm:$0xff]
    %v29 = vld [vmem:[%s2 + $0x10] sm:$0xff]
    %v30 = vld [vmem:[%s2 + $0x18] sm:$0xff]
    %35 = vrot.lane.b32.xlu0 %v27, 64
    %v36 = vpop.permute.xlu0 %35
    %37 = vrot.lane.b32.xlu0 %v28, 64
    %v38 = vpop.permute.xlu0 %37
    %39 = vrot.lane.b32.xlu0 %v29, 64
    %v40 = vpop.permute.xlu0 %39
    %41 = vrot.lane.b32.xlu0 %v30, 64
    %v42 = vpop.permute.xlu0 %41
    %vm47 = vcmask 261120
    %v49 = vsel %vm47, %v24, 0
    %v52 = vsel %vm47, %v25, 0
    %54 = vmatprep.subr.mxu0 0.0
    %55 = vmatpush1.msra.mxu0 %v36
    %56 = vmatprep.subr.mxu0 0.0
    %57 = vmatpush1.msra.mxu0 %v38
    %58 = vmatprep.subr.mxu0 0.0
    %59 = vmatpush1.msra.mxu0 %v40
    %60 = vmatprep.subr.mxu0 0.0
    %61 = vmatpush1.msra.mxu0 %v42
    %62 = vmatprep.subr.mxu0 0.0
    %63 = vmatpush1.msra.mxu0 0.0
    %64 = vmatprep.subr.mxu0 0.0
    %65 = vmatpush1.msra.mxu0 0.0
    %66 = vmatprep.subr.mxu0 0.0
    %67 = vmatpush1.msra.mxu0 0.0
    %68 = vmatprep.subr.mxu0 0.0
    %69 = vmatpush1.msra.mxu0 0.0
    %70 = vmatprep.subr.mxu0 0.0
    %71 = vmatpush1.msra.mxu0 0.0
    %72 = vmatprep.subr.mxu0 0.0
    %73 = vmatpush1.msra.mxu0 0.0
    %74 = vmatprep.subr.mxu0 0.0
    %75 = vmatpush1.msra.mxu0 0.0
    %76 = vmatprep.subr.mxu0 0.0
    %77 = vmatpush1.msra.mxu0 0.0
    %78 = vmatprep.subr.mxu0 0.0
    %79 = vmatpush1.msra.mxu0 0.0
    %80 = vmatprep.subr.mxu0 0.0
    %81 = vmatpush1.msra.mxu0 0.0
    %82 = vmatprep.subr.mxu0 0.0
    %83 = vmatpush1.msra.mxu0 0.0
    %84 = vmatprep.subr.mxu0 0.0
    %85 = vmatpush1.msra.mxu0 0.0
    %86 = vmatprep.subr.mxu0 0.0
    %87 = vmatpush1.msra.mxu0 0.0
    %88 = vmatprep.subr.mxu0 0.0
    %89 = vmatpush1.msra.mxu0 0.0
    %90 = vmatprep.subr.mxu0 0.0
    %91 = vmatpush1.msra.mxu0 0.0
    %92 = vmatprep.subr.mxu0 0.0
    %93 = vmatpush1.msra.mxu0 0.0
    %94 = vmatprep.subr.mxu0 0.0
    %95 = vmatpush1.msra.mxu0 0.0
    %96 = vmatprep.subr.mxu0 0.0
    %97 = vmatpush1.msra.mxu0 0.0
    %98 = vmatprep.subr.mxu0 0.0
    %99 = vmatpush1.msra.mxu0 0.0
    %100 = vmatprep.subr.mxu0 0.0
    %101 = vmatpush1.msra.mxu0 0.0
    %102 = vmatprep.subr.mxu0 0.0
    %103 = vmatpush1.msra.mxu0 0.0
    %104 = vmatprep.subr.mxu0 0.0
    %105 = vmatpush1.msra.mxu0 0.0
    %106 = vmatprep.subr.mxu0 0.0
    %107 = vmatpush1.msra.mxu0 0.0
    %108 = vmatprep.subr.mxu0 0.0
    %109 = vmatpush1.msra.mxu0 0.0
    %110 = vmatprep.subr.mxu0 0.0
    %111 = vmatpush1.msra.mxu0 0.0
    %112 = vmatprep.subr.mxu0 0.0
    %113 = vmatpush1.msra.mxu0 0.0
    %114 = vmatprep.subr.mxu0 0.0
    %115 = vmatpush1.msra.mxu0 0.0
    %116 = vmatprep.subr.mxu0 0.0
    %117 = vmatpush1.msra.mxu0 0.0
    %118 = vmatprep.mubr.f32.mxu0 0.0
    %119 = vmatmul.mubr.f32.gmra.mrb[0].mxu0 %v49
    %v120 = vpop.f32.mrb[0].mxu0
    %v121 = vadd.f32 0.0, %v120
    %v122 = vpop.f32.mrb[0].mxu0
    %123 = vmatprep.mubr.f32.mxu0 0.0
    %124 = vmatmul.mubr.f32.gmra.mrb[0].mxu0 %v52
    %v125 = vpop.f32.mrb[0].mxu0
    %v126 = vadd.f32 0.0, %v125
    %v127 = vpop.f32.mrb[0].mxu0
    %128 = vdwg.mxu0
    %v129 = vadd.f32 %v22, %v26
    %v130 = vadd.f32 %v23, %v26
    %v132 = vsel %vm47, %v129, 0
    %v135 = vsel %vm47, %v130, 0
    %137 = vmatprep.subr.mxu0 0.0
    %138 = vmatpush1.msra.mxu0 %v27
    %139 = vmatprep.subr.mxu0 0.0
    %140 = vmatpush1.msra.mxu0 %v28
    %141 = vmatprep.subr.mxu0 0.0
    %142 = vmatpush1.msra.mxu0 %v29
    %143 = vmatprep.subr.mxu0 0.0
    %144 = vmatpush1.msra.mxu0 %v30
    %145 = vmatprep.subr.mxu0 0.0
    %146 = vmatpush1.msra.mxu0 0.0
    %147 = vmatprep.subr.mxu0 0.0
    %148 = vmatpush1.msra.mxu0 0.0
    %149 = vmatprep.subr.mxu0 0.0
    %150 = vmatpush1.msra.mxu0 0.0
    %151 = vmatprep.subr.mxu0 0.0
    %152 = vmatpush1.msra.mxu0 0.0
    %153 = vmatprep.subr.mxu0 0.0
    %154 = vmatpush1.msra.mxu0 0.0
    %155 = vmatprep.subr.mxu0 0.0
    %156 = vmatpush1.msra.mxu0 0.0
    %157 = vmatprep.subr.mxu0 0.0
    %158 = vmatpush1.msra.mxu0 0.0
    %159 = vmatprep.subr.mxu0 0.0
    %160 = vmatpush1.msra.mxu0 0.0
    %161 = vmatprep.subr.mxu0 0.0
    %162 = vmatpush1.msra.mxu0 0.0
    %163 = vmatprep.subr.mxu0 0.0
    %164 = vmatpush1.msra.mxu0 0.0
    %165 = vmatprep.subr.mxu0 0.0
    %166 = vmatpush1.msra.mxu0 0.0
    %167 = vmatprep.subr.mxu0 0.0
    %168 = vmatpush1.msra.mxu0 0.0
    %169 = vmatprep.subr.mxu0 0.0
    %170 = vmatpush1.msra.mxu0 0.0
    %171 = vmatprep.subr.mxu0 0.0
    %172 = vmatpush1.msra.mxu0 0.0
    %173 = vmatprep.subr.mxu0 0.0
    %174 = vmatpush1.msra.mxu0 0.0
    %175 = vmatprep.subr.mxu0 0.0
    %176 = vmatpush1.msra.mxu0 0.0
    %177 = vmatprep.subr.mxu0 0.0
    %178 = vmatpush1.msra.mxu0 0.0
    %179 = vmatprep.subr.mxu0 0.0
    %180 = vmatpush1.msra.mxu0 0.0
    %181 = vmatprep.subr.mxu0 0.0
    %182 = vmatpush1.msra.mxu0 0.0
    %183 = vmatprep.subr.mxu0 0.0
    %184 = vmatpush1.msra.mxu0 0.0
    %185 = vmatprep.subr.mxu0 0.0
    %186 = vmatpush1.msra.mxu0 0.0
    %187 = vmatprep.subr.mxu0 0.0
    %188 = vmatpush1.msra.mxu0 0.0
    %189 = vmatprep.subr.mxu0 0.0
    %190 = vmatpush1.msra.mxu0 0.0
    %191 = vmatprep.subr.mxu0 0.0
    %192 = vmatpush1.msra.mxu0 0.0
    %193 = vmatprep.subr.mxu0 0.0
    %194 = vmatpush1.msra.mxu0 0.0
    %195 = vmatprep.subr.mxu0 0.0
    %196 = vmatpush1.msra.mxu0 0.0
    %197 = vmatprep.subr.mxu0 0.0
    %198 = vmatpush1.msra.mxu0 0.0
    %199 = vmatprep.subr.mxu0 0.0
    %200 = vmatpush1.msra.mxu0 0.0
    %201 = vmatprep.mubr.f32.mxu0 0.0
    %202 = vmatmul.mubr.f32.gmra.mrb[0].mxu0 %v132
    %v203 = vpop.f32.mrb[0].mxu0
    %v204 = vadd.f32 0.0, %v203
    %v205 = vpop.f32.mrb[0].mxu0
    %206 = vmatprep.mubr.f32.mxu0 0.0
    %207 = vmatmul.mubr.f32.gmra.mrb[0].mxu0 %v135
    %v208 = vpop.f32.mrb[0].mxu0
    %v209 = vadd.f32 0.0, %v208
    %v210 = vpop.f32.mrb[0].mxu0
    %211 = vdwg.mxu0
    %v212 = vlaneseq
    %v213 = vshrl.u32 %v212, 7
    %s214 = sld [smem:[#allocation3]]
    %v215 = vstv %s214
    %s216 = sld [smem:[#allocation3 + $0x1]]
    %v217 = vstv %s216
    %vm218 = vcmp.lt.s32.totalorder %v213, %v215
    %vm219 = vcmp.lt.s32.totalorder %v213, %v217
    %v220 = vsel %vm218, 1, 0
    %v221 = vsel %vm219, 1, 0
    %vm222 = vcmp.eq.s32.totalorder %v220, 1
    %vm223 = vcmp.eq.s32.totalorder %v221, 1
    %v224 = vsel %vm222, %v204, -1e+30
    %v225 = vsel %vm223, %v209, -1e+30
    %vm226 = vcmask 523520
    %v227 = vsel %vm226, %v224, -inf
    %v228 = vrot.slane %v227, 4
    %v229 = vmax.f32 %v227, %v228
    %v230 = vrot.slane %v229, 2
    %v231 = vmax.f32 %v229, %v230
    %v232 = vrot.slane %v231, 1
    %v233 = vmax.f32 %v231, %v232
    %v234 = vsel %vm226, %v225, -inf
    %v235 = vrot.slane %v234, 4
    %v236 = vmax.f32 %v234, %v235
    %v237 = vrot.slane %v236, 2
    %v238 = vmax.f32 %v236, %v237
    %v239 = vrot.slane %v238, 1
    %v240 = vmax.f32 %v238, %v239
    %v241 = vsub.f32 %v224, %v233
    %v242 = vsub.f32 %v225, %v240
    %v243 = vmul.f32 %v241, 1.442695
    %v244 = vpow.pop %v243
    %v245 = vmul.f32 %v242, 1.442695
    %v246 = vpow.pop %v245
    %249 = vrot.lane.b32.xlu0 %v204, 32
    %v250 = vpop.permute.xlu0 %249
    %251 = vrot.lane.b32.xlu0 %v209, 32
    %v252 = vpop.permute.xlu0 %251
    %v255 = vmul.f32 %v244, %v250
    %v256 = vmul.f32 %v246, %v252
    %v257 = vsel %vm226, %v255, 0.0
    %v258 = vrot.slane %v257, 4
    %v259 = vadd.f32 %v257, %v258
    %v260 = vrot.slane %v259, 2
    %v261 = vadd.f32 %v259, %v260
    %v262 = vrot.slane %v261, 1
    %v263 = vadd.f32 %v261, %v262
    %v264 = vsel %vm226, %v256, 0.0
    %v265 = vrot.slane %v264, 4
    %v266 = vadd.f32 %v264, %v265
    %v267 = vrot.slane %v266, 2
    %v268 = vadd.f32 %v266, %v267
    %v269 = vrot.slane %v268, 1
    %v270 = vadd.f32 %v268, %v269
    %v271 = vsel %vm226, %v244, 0.0
    %v272 = vrot.slane %v271, 4
    %v273 = vadd.f32 %v271, %v272
    %v274 = vrot.slane %v273, 2
    %v275 = vadd.f32 %v273, %v274
    %v276 = vrot.slane %v275, 1
    %v277 = vadd.f32 %v275, %v276
    %v278 = vsel %vm226, %v246, 0.0
    %v279 = vrot.slane %v278, 4
    %v280 = vadd.f32 %v278, %v279
    %v281 = vrot.slane %v280, 2
    %v282 = vadd.f32 %v280, %v281
    %v283 = vrot.slane %v282, 1
    %v284 = vadd.f32 %v282, %v283
    %v285 = vrcp.pop %v277
    %v286 = vrcp.pop %v284
    %v287 = vmul.f32 %v263, %v285
    %v288 = vmul.f32 %v270, %v286
    %vm291 = vcmask 1041409
    %v292 = vsel %vm291, %v288, %v287
    %293 = vrot.lane.b32.xlu0 %v292, 96
    %v294 = vpop.permute.xlu0 %293
    %vm296 = vcmask 254976
    %297 = vst.msk [vmem:[#allocation6] sm:$0x3] %vm296, %v294
    %v298 = vsel %vm47, %v294, 0
    %300 = vmatprep.subr.mxu0 0.0
    %301 = vmatpush1.msra.mxu0 %v36
    %302 = vmatprep.subr.mxu0 0.0
    %303 = vmatpush1.msra.mxu0 %v38
    %304 = vmatprep.subr.mxu0 0.0
    %305 = vmatpush1.msra.mxu0 %v40
    %306 = vmatprep.subr.mxu0 0.0
    %307 = vmatpush1.msra.mxu0 %v42
    %308 = vmatprep.subr.mxu0 0.0
    %309 = vmatpush1.msra.mxu0 0.0
    %310 = vmatprep.subr.mxu0 0.0
    %311 = vmatpush1.msra.mxu0 0.0
    %312 = vmatprep.subr.mxu0 0.0
    %313 = vmatpush1.msra.mxu0 0.0
    %314 = vmatprep.subr.mxu0 0.0
    %315 = vmatpush1.msra.mxu0 0.0
    %316 = vmatprep.subr.mxu0 0.0
    %317 = vmatpush1.msra.mxu0 0.0
    %318 = vmatprep.subr.mxu0 0.0
    %319 = vmatpush1.msra.mxu0 0.0
    %320 = vmatprep.subr.mxu0 0.0
    %321 = vmatpush1.msra.mxu0 0.0
    %322 = vmatprep.subr.mxu0 0.0
    %323 = vmatpush1.msra.mxu0 0.0
    %324 = vmatprep.subr.mxu0 0.0
    %325 = vmatpush1.msra.mxu0 0.0
    %326 = vmatprep.subr.mxu0 0.0
    %327 = vmatpush1.msra.mxu0 0.0
    %328 = vmatprep.subr.mxu0 0.0
    %329 = vmatpush1.msra.mxu0 0.0
    %330 = vmatprep.subr.mxu0 0.0
    %331 = vmatpush1.msra.mxu0 0.0
    %332 = vmatprep.subr.mxu0 0.0
    %333 = vmatpush1.msra.mxu0 0.0
    %334 = vmatprep.subr.mxu0 0.0
    %335 = vmatpush1.msra.mxu0 0.0
    %336 = vmatprep.subr.mxu0 0.0
    %337 = vmatpush1.msra.mxu0 0.0
    %338 = vmatprep.subr.mxu0 0.0
    %339 = vmatpush1.msra.mxu0 0.0
    %340 = vmatprep.subr.mxu0 0.0
    %341 = vmatpush1.msra.mxu0 0.0
    %342 = vmatprep.subr.mxu0 0.0
    %343 = vmatpush1.msra.mxu0 0.0
    %344 = vmatprep.subr.mxu0 0.0
    %345 = vmatpush1.msra.mxu0 0.0
    %346 = vmatprep.subr.mxu0 0.0
    %347 = vmatpush1.msra.mxu0 0.0
    %348 = vmatprep.subr.mxu0 0.0
    %349 = vmatpush1.msra.mxu0 0.0
    %350 = vmatprep.subr.mxu0 0.0
    %351 = vmatpush1.msra.mxu0 0.0
    %352 = vmatprep.subr.mxu0 0.0
    %353 = vmatpush1.msra.mxu0 0.0
    %354 = vmatprep.subr.mxu0 0.0
    %355 = vmatpush1.msra.mxu0 0.0
    %356 = vmatprep.subr.mxu0 0.0
    %357 = vmatpush1.msra.mxu0 0.0
    %358 = vmatprep.subr.mxu0 0.0
    %359 = vmatpush1.msra.mxu0 0.0
    %360 = vmatprep.subr.mxu0 0.0
    %361 = vmatpush1.msra.mxu0 0.0
    %362 = vmatprep.subr.mxu0 0.0
    %363 = vmatpush1.msra.mxu0 0.0
    %364 = vmatprep.mubr.f32.mxu0 0.0
    %365 = vmatmul.mubr.f32.gmra.mrb[0].mxu0 %v298
    %v366 = vpop.f32.mrb[0].mxu0
    %v367 = vadd.f32 0.0, %v366
    %v368 = vpop.f32.mrb[0].mxu0
    %369 = vdwg.mxu0
    %v372 = vunpack.c.l.s4 1966171168
    %v373 = vunpack.c.0.s8 %v372
    %v374 = vlaneseq
    %v375 = vshrl.u32 %v374, 7
    %v376 = vsub.s32 %v373, %v375
    %v377 = vrot.slane %v367, %v376
    %v378 = vcombine.high %v377, %v377
    %v380 = vunpack.c.l.s4 1966171168
    %v381 = vunpack.c.0.s8 %v380
    %v382 = vlaneseq
    %v383 = vshrl.u32 %v382, 7
    %v384 = vsub.s32 %v381, %v383
    %v385 = vrot.slane %v377, %v384
    %v387 = vunpack.c.l.s4 1966171168
    %v388 = vunpack.c.0.s8 %v387
    %v389 = vlaneseq
    %v390 = vshrl.u32 %v389, 7
    %v391 = vsub.s32 %v388, %v390
    %v392 = vrot.slane %v378, %v391
    %v393 = vlaneseq
    %v394 = vshrl.u32 %v393, 7
    %v395 = vsub.s32 0, %v394
    %v396 = vrot.slane %v385, %v395
    %v397 = vlaneseq
    %v398 = vshrl.u32 %v397, 7
    %v399 = vsub.s32 0, %v398
    %v400 = vrot.slane %v392, %v399
    %v403 = vadd.f32 %v121, %v396
    %v404 = vadd.f32 %v126, %v400
    %vm405 = vcmask 523264
    %406 = vst.msk [vmem:[#allocation4] sm:$0xff] %vm405, %v403
    %407 = vst.msk [vmem:[#allocation4 + $0x8] sm:$0xff] %vm405, %v404
    // Predicated region
    $region10: #{_fused_forward.1} parent=1 // pred_check
      _
    $region11: #{_fused_forward.1} parent=1 // pred_check_branch
      %409 = sbr.rel (0) target = $region13
    $region12: #{_fused_forward.1} parent=1 // pred_region
      %s411 = ssub.s32 256, 256
      %412 = vsyncadd [#allocation5], %s411
      %s413 = sshll.u32 [#allocation4], 4
      %s414 = int_to_ptr.vmem [resolvable:$true] %s413
      %419 = dma.vmem_to_hbm [thread:$0]  %s414, 256, %s3, [#allocation5], 128, 128, 8
    $region13: #{_fused_forward.1} parent=1 // pred_fallthru
      _
    // Predicated region
    $region14: #{_fused_forward.1} parent=1 // pred_check
      _
    $region15: #{_fused_forward.1} parent=1 // pred_check_branch
      %421 = sbr.rel (0) target = $region17
    $region16: #{_fused_forward.1} parent=1 // pred_region
      %s423 = ssub.s32 32, 32
      %424 = vsyncadd [#allocation7], %s423
      %s426 = sshll.u32 [#allocation6], 4
      %s427 = int_to_ptr.vmem [resolvable:$true] %s426
      %429 = dma.vmem_to_hbm [thread:$0]  %s427, 32, %s4, [#allocation7]
    $region17: #{_fused_forward.1} parent=1 // pred_fallthru
      _
    // Predicated region
    $region18: #{_fused_forward.1} parent=1 // pred_check
      _
    $region19: #{_fused_forward.1} parent=1 // pred_check_branch
      %431 = sbr.rel (0) target = $region21
    $region20: #{_fused_forward.1} parent=1 // pred_region
      %432 = dma.done [#allocation5], 256
    $region21: #{_fused_forward.1} parent=1 // pred_fallthru
      _
    // Predicated region
    $region22: #{_fused_forward.1} parent=1 // pred_check
      _
    $region23: #{_fused_forward.1} parent=1 // pred_check_branch
      %434 = sbr.rel (0) target = $region25
    $region24: #{_fused_forward.1} parent=1 // pred_region
      %435 = dma.done [#allocation7], 32
    $region25: #{_fused_forward.1} parent=1 // pred_fallthru
      _
    %436 = vsyncpa [#allocation5], 1
    %437 = vsyncpa [#allocation7], 1

</llo_original>
